<compile_context>
chip_gen: v7x
topology: tpu7x:2x2x1
jax: 0.10.0
libtpu: 0.0.40
codegen_flags: <defaults>
</compile_context>

<pallas_src>
import functools

import jax
import jax.numpy as jnp
from jax.experimental import pallas as pl
from jax.experimental.pallas import tpu as pltpu

LN_EPS = 1e-5


def _round_up(x, m):
    return ((x + m - 1) // m) * m


def _normfc_kernel(x_ref, gamma_ref, beta_ref, w_ref, b_ref, o_ref):
    # x_ref:     (tile_m, F)           input rows (input dtype)
    # gamma_ref: (1, F) f32            LayerNorm scale
    # beta_ref:  (1, F) f32            LayerNorm shift
    # w_ref:     (F, E)                Linear weight, pre-transposed, compute dtype
    # b_ref:     (1, E) f32            Linear bias
    # o_ref:     (tile_m // R, E * R)  lane-dense packed output (R==1 -> (tile_m, E))
    x = x_ref[...].astype(jnp.float32)

    # LayerNorm over the feature (lane) axis; statistics in f32 (matches torch).
    mean = jnp.mean(x, axis=-1, keepdims=True)
    centered = x - mean
    var = jnp.mean(centered * centered, axis=-1, keepdims=True)
    inv = jax.lax.rsqrt(var + LN_EPS)
    xn = centered * inv * gamma_ref[...] + beta_ref[...]

    # MXU matmul in the weight's dtype (bf16 by default), f32 accumulation.
    z = jnp.dot(xn.astype(w_ref.dtype), w_ref[...],
                preferred_element_type=jnp.float32)
    z = z + b_ref[...]

    # Row-major repack (tile_m, E) -> (tile_m // R, E * R): full 128-lane vst
    # instead of masked vst.msk partial stores.  No-op when R == 1.
    o_ref[...] = z.reshape(o_ref.shape).astype(o_ref.dtype)


@functools.lru_cache(maxsize=None)
def _build_normfc_call(m_pad, f, e, tile_m, r, out_dtype_name,
                       single_buffer_consts, vmem_limit_bytes):
    out_dtype = jnp.dtype(out_dtype_name)
    grid = (pl.cdiv(m_pad, tile_m),)

    const_kwargs = {}
    if single_buffer_consts:
        # Constant-index operands never change between grid steps, so they do
        # not need double buffering; saves VMEM (matters on v7x's 64 MiB).
        const_kwargs = dict(pipeline_mode=pl.Buffered(1))

    def const_spec(shape):
        return pl.BlockSpec(shape, lambda i: (0,) * len(shape), **const_kwargs)

    out_shape = jax.ShapeDtypeStruct((m_pad // r, e * r), out_dtype)
    out_spec = pl.BlockSpec((tile_m // r, e * r), lambda i: (i, 0))

    call = pl.pallas_call(
        _normfc_kernel,
        out_shape=out_shape,
        grid_spec=pltpu.PrefetchScalarGridSpec(
            num_scalar_prefetch=0,
            grid=grid,
            in_specs=[
                pl.BlockSpec((tile_m, f), lambda i: (i, 0)),  # x rows (pipelined)
                const_spec((1, f)),                           # gamma
                const_spec((1, f)),                           # beta
                const_spec((f, e)),                           # weight (F, E)
                const_spec((1, e)),                           # bias
            ],
            out_specs=out_spec,
        ),
        compiler_params=pltpu.CompilerParams(
            dimension_semantics=("parallel",),
            vmem_limit_bytes=vmem_limit_bytes,
        ),
    )

    @jax.jit
    def run(x2d, gamma2d, beta2d, w_t, b2d):
        out = call(x2d, gamma2d, beta2d, w_t, b2d)
        # Free row-major reinterpretation back to one row per (batch, time).
        return out.reshape(m_pad, e)

    return run


# Remembers which kernel variant compiled+ran successfully per shape signature.
_VARIANT_CACHE = {}


def normfc_forward(xb, gamma, beta, w, b, *, tile_m=None,
                   compute_dtype=jnp.bfloat16):
    """Fused LayerNorm + Linear (NormFC forward, treat_channel_as_feature=True).

    xb:    (batch, n_time, in_chan, ribw)
    gamma: (F,)   beta: (F,)      with F = in_chan * ribw
    w:     (E, F) (PyTorch nn.Linear layout)
    b:     (E,)
    returns (batch, n_time, E)

    `compute_dtype` is the MXU operand dtype (accumulation is always f32);
    pass jnp.float32 for a bit-faithful f32 matmul.
    """
    batch, n_time, in_chan, ribw = xb.shape
    f = in_chan * ribw
    e = w.shape[0]
    m = batch * n_time
    out_dtype = jnp.dtype(xb.dtype)
    compute_dtype = jnp.dtype(compute_dtype)

    # Output-lane packing factor: fold R rows into one 128-lane output row.
    r = 128 // e if (e < 128 and 128 % e == 0) else 1

    # Row-tile granularity: 8 sublanes (16 for sub-32-bit inputs) and a
    # multiple of R so the packed output block stays (8k, 128) aligned.
    sublane = 16 if out_dtype.itemsize < 4 else 8
    base = max(8 * r, sublane)

    if tile_m is None:
        tile_m = 512  # big tiles amortize the ~0.35us fixed cost per grid step
    tile_m = max(base, _round_up(min(tile_m, _round_up(m, base)), base))
    # Prefer >= 2 grid steps so both v7x TensorCores get work.
    if _round_up(m, tile_m) // tile_m < 2 and tile_m >= 2 * base:
        tile_m = _round_up(max(base, -(-m // 2)), base)
    m_pad = _round_up(m, tile_m)

    # VMEM budget: double-buffered x / out blocks, (possibly double-buffered)
    # constants, plus in-kernel f32 temporaries.  Ask for generous headroom,
    # but stay below v7x's 64 MiB physical VMEM.
    est = (2 * tile_m * f * out_dtype.itemsize
           + 2 * tile_m * e * out_dtype.itemsize
           + 2 * (f * e * compute_dtype.itemsize + (2 * f + e) * 4)
           + tile_m * (f + e) * 4)
    vmem_limit = int(min(48 * 2**20, max(32 * 2**20, 4 * est)))

    # Wrapper-side layout plumbing (cheap, fused by XLA).
    x2d = xb.reshape(m, f)
    if m_pad != m:
        x2d = jnp.pad(x2d, ((0, m_pad - m), (0, 0)))
    gamma2d = gamma.astype(jnp.float32).reshape(1, f)
    beta2d = beta.astype(jnp.float32).reshape(1, f)
    w_t = w.T.astype(compute_dtype)          # (F, E), cast once (not per step)
    b2d = b.astype(jnp.float32).reshape(1, e)

    key = (m_pad, f, e, tile_m, r, out_dtype.name, compute_dtype.name,
           vmem_limit)
    cached = _VARIANT_CACHE.get(key)
    if cached is not None:
        r_eff, single_buf = cached
        run = _build_normfc_call(m_pad, f, e, tile_m, r_eff, out_dtype.name,
                                 single_buf, vmem_limit)
        out2d = run(x2d, gamma2d, beta2d, w_t, b2d)
    else:
        # Try the most aggressive layout first; fall back if this Pallas /
        # Mosaic build rejects the packed store or Buffered(1).
        candidates = []
        for cand in ((r, True), (r, False), (1, True), (1, False)):
            if cand not in candidates:
                candidates.append(cand)
        out2d, last_err = None, None
        for r_eff, single_buf in candidates:
            try:
                run = _build_normfc_call(m_pad, f, e, tile_m, r_eff,
                                         out_dtype.name, single_buf,
                                         vmem_limit)
                out2d = jax.block_until_ready(
                    run(x2d, gamma2d, beta2d, w_t, b2d))
                _VARIANT_CACHE[key] = (r_eff, single_buf)
                break
            except Exception as err:  # noqa: BLE001 - fall back to simpler layout
                last_err = err
        if out2d is None:
            raise last_err

    if m_pad != m:
        out2d = out2d[:m]
    return out2d.reshape(batch, n_time, e)


def make_normfc_params(key, emb_dim, bandwidth, in_channel,
                       treat_channel_as_feature=True, dtype=jnp.float32):
    """Deterministic synthetic parameters matching NormFC.__init__ shapes."""
    assert treat_channel_as_feature, \
        "only the default treat_channel_as_feature=True path is implemented"
    reim = 2
    F = in_channel * bandwidth * reim   # LayerNorm normalized dim == fc_in
    E = emb_dim
    k1, k2, k3, k4 = jax.random.split(key, 4)
    # LayerNorm default init is gamma=1, beta=0; perturb slightly but
    # deterministically so the affine path is exercised.
    gamma = jnp.ones((F,), dtype) + 0.01 * jax.random.normal(k1, (F,), dtype)
    beta = 0.01 * jax.random.normal(k2, (F,), dtype)
    # nn.Linear-style uniform(-1/sqrt(F), 1/sqrt(F)) init.
    bound = 1.0 / jnp.sqrt(jnp.asarray(F, jnp.float32))
    w = jax.random.uniform(k3, (E, F), dtype, -bound, bound)
    b = jax.random.uniform(k4, (E,), dtype, -bound, bound)
    return gamma, beta, w, b


def _reference(xb, gamma, beta, w, b, *, matmul_dtype=None):
    """Pure-JAX reference mirroring the PyTorch forward (LN in f32)."""
    batch, n_time, in_chan, ribw = xb.shape
    x = xb.reshape(batch, n_time, in_chan * ribw).astype(jnp.float32)
    mean = jnp.mean(x, axis=-1, keepdims=True)
    var = jnp.mean((x - mean) ** 2, axis=-1, keepdims=True)
    inv = jax.lax.rsqrt(var + LN_EPS)
    xn = (x - mean) * inv
    xn = xn * gamma.astype(jnp.float32) + beta.astype(jnp.float32)
    wt = w.T.astype(jnp.float32)
    if matmul_dtype is not None:
        xn = xn.astype(matmul_dtype)
        wt = wt.astype(matmul_dtype)
    z = jnp.dot(xn, wt, preferred_element_type=jnp.float32)
    return z + b.astype(jnp.float32)


if __name__ == "__main__":
    # Shapes consistent with the module:
    #   emb_dim=32, bandwidth=8, in_channel=4 -> F = 4*8*2 = 64, E = 32.
    emb_dim, bandwidth, in_channel = 32, 8, 4
    ribw = 2 * bandwidth

    key = jax.random.PRNGKey(0)
    kx1, kx2, kp = jax.random.split(key, 3)
    gamma, beta, w, b = make_normfc_params(kp, emb_dim, bandwidth, in_channel)

    # Two cases: a tiny one, and one whose row count (150) is NOT a multiple
    # of the row tile (exercises the padding / pl.cdiv grid and a >=2-step
    # grid for v7x megacore).
    cases = [((2, 8), kx1), ((3, 50), kx2)]
    for (batch, n_time), kx in cases:
        xb = jax.random.normal(kx, (batch, n_time, in_channel, ribw),
                               jnp.float32)
        out = jax.block_until_ready(normfc_forward(xb, gamma, beta, w, b))
        assert out.shape == (batch, n_time, emb_dim), out.shape

        ref_f32 = _reference(xb, gamma, beta, w, b)
        ref_bf16 = _reference(xb, gamma, beta, w, b,
                              matmul_dtype=jnp.bfloat16)
        # Tight check against the same mixed-precision recipe (bf16 MXU
        # operands, f32 accumulation) ...
        assert jnp.allclose(out, ref_bf16, atol=5e-3, rtol=5e-3), \
            float(jnp.max(jnp.abs(out - ref_bf16)))
        # ... and a looser check against exact f32 PyTorch semantics.
        assert jnp.allclose(out, ref_f32, atol=2e-2, rtol=2e-2), \
            float(jnp.max(jnp.abs(out - ref_f32)))

    print("KERNEL_OK")
</pallas_src>

<mosaic_0001>
module attributes {stable_mosaic.version = 11 : i64} {
  func.func @_normfc_kernel(%arg0: i32, %arg1: memref<32x64xf32, #tpu.memory_space<vmem>>, %arg2: memref<1x64xf32, #tpu.memory_space<vmem>>, %arg3: memref<1x64xf32, #tpu.memory_space<vmem>>, %arg4: memref<64x32xbf16, #tpu.memory_space<vmem>>, %arg5: memref<1x32xf32, #tpu.memory_space<vmem>>, %arg6: memref<8x128xf32, #tpu.memory_space<vmem>>) attributes {dimension_semantics = [#tpu.dimension_semantics<parallel>], iteration_bounds = array<i64: 1>, scalar_prefetch = 0 : i64, scratch_operands = 0 : i64, tpu.core_type = #tpu.core_type<tc>, window_params = [{transform_indices = @transform_0, window_bounds = array<i64: 32, 64>}, {pipeline_mode = #tpu.pipeline_mode<synchronous>, transform_indices = @transform_1, window_bounds = array<i64: 1, 64>}, {pipeline_mode = #tpu.pipeline_mode<synchronous>, transform_indices = @transform_2, window_bounds = array<i64: 1, 64>}, {pipeline_mode = #tpu.pipeline_mode<synchronous>, transform_indices = @transform_3, window_bounds = array<i64: 64, 32>}, {pipeline_mode = #tpu.pipeline_mode<synchronous>, transform_indices = @transform_4, window_bounds = array<i64: 1, 32>}, {transform_indices = @transform_5, window_bounds = array<i64: 8, 128>}]} {
    %c0 = arith.constant 0 : index
    %c0_0 = arith.constant 0 : index
    %0 = vector.load %arg1[%c0, %c0_0] : memref<32x64xf32, #tpu.memory_space<vmem>>, vector<32x64xf32>
    %cst = arith.constant dense<0.000000e+00> : vector<32xf32>
    %1 = vector.multi_reduction <add>, %0, %cst [1] : vector<32x64xf32> to vector<32xf32>
    %2 = vector.shape_cast %1 : vector<32xf32> to vector<32x1xf32>
    %cst_1 = arith.constant 6.400000e+01 : f32
    %3 = vector.broadcast %cst_1 : f32 to vector<32x1xf32>
    %4 = arith.divf %2, %3 : vector<32x1xf32>
    %5 = vector.broadcast %4 : vector<32x1xf32> to vector<32x64xf32>
    %6 = arith.subf %0, %5 : vector<32x64xf32>
    %7 = arith.mulf %6, %6 : vector<32x64xf32>
    %cst_2 = arith.constant dense<0.000000e+00> : vector<32xf32>
    %8 = vector.multi_reduction <add>, %7, %cst_2 [1] : vector<32x64xf32> to vector<32xf32>
    %9 = vector.shape_cast %8 : vector<32xf32> to vector<32x1xf32>
    %cst_3 = arith.constant 6.400000e+01 : f32
    %10 = vector.broadcast %cst_3 : f32 to vector<32x1xf32>
    %11 = arith.divf %9, %10 : vector<32x1xf32>
    %cst_4 = arith.constant 9.99999974E-6 : f32
    %12 = vector.broadcast %cst_4 : f32 to vector<32x1xf32>
    %13 = arith.addf %11, %12 : vector<32x1xf32>
    %14 = math.rsqrt %13 : vector<32x1xf32>
    %15 = vector.broadcast %14 : vector<32x1xf32> to vector<32x64xf32>
    %16 = arith.mulf %6, %15 : vector<32x64xf32>
    %c0_5 = arith.constant 0 : index
    %c0_6 = arith.constant 0 : index
    %17 = vector.load %arg2[%c0_5, %c0_6] : memref<1x64xf32, #tpu.memory_space<vmem>>, vector<1x64xf32>
    %18 = vector.broadcast %17 : vector<1x64xf32> to vector<32x64xf32>
    %19 = arith.mulf %16, %18 : vector<32x64xf32>
    %c0_7 = arith.constant 0 : index
    %c0_8 = arith.constant 0 : index
    %20 = vector.load %arg3[%c0_7, %c0_8] : memref<1x64xf32, #tpu.memory_space<vmem>>, vector<1x64xf32>
    %21 = vector.broadcast %20 : vector<1x64xf32> to vector<32x64xf32>
    %22 = arith.addf %19, %21 : vector<32x64xf32>
    %23 = arith.truncf %22 : vector<32x64xf32> to vector<32x64xbf16>
    %c0_9 = arith.constant 0 : index
    %c0_10 = arith.constant 0 : index
    %24 = vector.load %arg4[%c0_9, %c0_10] : memref<64x32xbf16, #tpu.memory_space<vmem>>, vector<64x32xbf16>
    %cst_11 = arith.constant dense<0.000000e+00> : vector<32x32xf32>
    %25 = tpu.matmul %23, %24, %cst_11 {dimension_numbers = #tpu.dot_dimension_numbers<[1], [0], [0], [1], [0, 0, 1, 1], [], []>} : vector<32x64xbf16>, vector<64x32xbf16>, vector<32x32xf32> -> vector<32x32xf32>
    %c0_12 = arith.constant 0 : index
    %c0_13 = arith.constant 0 : index
    %26 = vector.load %arg5[%c0_12, %c0_13] : memref<1x32xf32, #tpu.memory_space<vmem>>, vector<1x32xf32>
    %27 = vector.broadcast %26 : vector<1x32xf32> to vector<32x32xf32>
    %28 = arith.addf %25, %27 : vector<32x32xf32>
    %29 = vector.shape_cast %28 : vector<32x32xf32> to vector<8x128xf32>
    %c0_14 = arith.constant 0 : index
    %c0_15 = arith.constant 0 : index
    %30 = vector.load %arg6[%c0_14, %c0_15] : memref<8x128xf32, #tpu.memory_space<vmem>>, vector<8x128xf32>
    tpu.vector_store %arg6[%c0_14, %c0_15], %29 {strides = array<i32>} : memref<8x128xf32, #tpu.memory_space<vmem>>, vector<8x128xf32>,
    return
  }
  func.func @transform_0(%arg0: i32) -> (i32, i32) {
    %c0_i32 = arith.constant 0 : i32
    %c0_i32_0 = arith.constant 0 : i32
    return %arg0, %c0_i32 : i32, i32
  }
  func.func @transform_1(%arg0: i32) -> (i32, i32) {
    %c0_i32 = arith.constant 0 : i32
    %c0_i32_0 = arith.constant 0 : i32
    %c0_i32_1 = arith.constant 0 : i32
    return %c0_i32, %c0_i32_0 : i32, i32
  }
  func.func @transform_2(%arg0: i32) -> (i32, i32) {
    %c0_i32 = arith.constant 0 : i32
    %c0_i32_0 = arith.constant 0 : i32
    %c0_i32_1 = arith.constant 0 : i32
    return %c0_i32, %c0_i32_0 : i32, i32
  }
  func.func @transform_3(%arg0: i32) -> (i32, i32) {
    %c0_i32 = arith.constant 0 : i32
    %c0_i32_0 = arith.constant 0 : i32
    %c0_i32_1 = arith.constant 0 : i32
    return %c0_i32, %c0_i32_0 : i32, i32
  }
  func.func @transform_4(%arg0: i32) -> (i32, i32) {
    %c0_i32 = arith.constant 0 : i32
    %c0_i32_0 = arith.constant 0 : i32
    %c0_i32_1 = arith.constant 0 : i32
    return %c0_i32, %c0_i32_0 : i32, i32
  }
  func.func @transform_5(%arg0: i32) -> (i32, i32) {
    %c0_i32 = arith.constant 0 : i32
    %c0_i32_0 = arith.constant 0 : i32
    return %arg0, %c0_i32 : i32, i32
  }
}

module attributes {stable_mosaic.version = 11 : i64} {
  func.func @_normfc_kernel(%arg0: i32, %arg1: memref<32x64xf32, #tpu.memory_space<vmem>>, %arg2: memref<1x64xf32, #tpu.memory_space<vmem>>, %arg3: memref<1x64xf32, #tpu.memory_space<vmem>>, %arg4: memref<64x32xbf16, #tpu.memory_space<vmem>>, %arg5: memref<1x32xf32, #tpu.memory_space<vmem>>, %arg6: memref<8x128xf32, #tpu.memory_space<vmem>>) attributes {dimension_semantics = [#tpu.dimension_semantics<parallel>], iteration_bounds = array<i64: 1>, scalar_prefetch = 0 : i64, scratch_operands = 0 : i64, tpu.core_type = #tpu.core_type<tc>, window_params = [{transform_indices = @transform_0, window_bounds = array<i64: 32, 64>}, {pipeline_mode = #tpu.pipeline_mode<synchronous>, transform_indices = @transform_1, window_bounds = array<i64: 1, 64>}, {pipeline_mode = #tpu.pipeline_mode<synchronous>, transform_indices = @transform_2, window_bounds = array<i64: 1, 64>}, {pipeline_mode = #tpu.pipeline_mode<synchronous>, transform_indices = @transform_3, window_bounds = array<i64: 64, 32>}, {pipeline_mode = #tpu.pipeline_mode<synchronous>, transform_indices = @transform_4, window_bounds = array<i64: 1, 32>}, {transform_indices = @transform_5, window_bounds = array<i64: 8, 128>}]} {
    %c0 = arith.constant 0 : index
    %c0_0 = arith.constant 0 : index
    %0 = vector.load %arg1[%c0, %c0_0] : memref<32x64xf32, #tpu.memory_space<vmem>>, vector<32x64xf32>
    %cst = arith.constant dense<0.000000e+00> : vector<32xf32>
    %1 = vector.multi_reduction <add>, %0, %cst [1] : vector<32x64xf32> to vector<32xf32>
    %2 = vector.shape_cast %1 : vector<32xf32> to vector<32x1xf32>
    %cst_1 = arith.constant 6.400000e+01 : f32
    %3 = vector.broadcast %cst_1 : f32 to vector<32x1xf32>
    %4 = arith.divf %2, %3 : vector<32x1xf32>
    %5 = vector.broadcast %4 : vector<32x1xf32> to vector<32x64xf32>
    %6 = arith.subf %0, %5 : vector<32x64xf32>
    %7 = arith.mulf %6, %6 : vector<32x64xf32>
    %cst_2 = arith.constant dense<0.000000e+00> : vector<32xf32>
    %8 = vector.multi_reduction <add>, %7, %cst_2 [1] : vector<32x64xf32> to vector<32xf32>
    %9 = vector.shape_cast %8 : vector<32xf32> to vector<32x1xf32>
    %cst_3 = arith.constant 6.400000e+01 : f32
    %10 = vector.broadcast %cst_3 : f32 to vector<32x1xf32>
    %11 = arith.divf %9, %10 : vector<32x1xf32>
    %cst_4 = arith.constant 9.99999974E-6 : f32
    %12 = vector.broadcast %cst_4 : f32 to vector<32x1xf32>
    %13 = arith.addf %11, %12 : vector<32x1xf32>
    %14 = math.rsqrt %13 : vector<32x1xf32>
    %15 = vector.broadcast %14 : vector<32x1xf32> to vector<32x64xf32>
    %16 = arith.mulf %6, %15 : vector<32x64xf32>
    %c0_5 = arith.constant 0 : index
    %c0_6 = arith.constant 0 : index
    %17 = vector.load %arg2[%c0_5, %c0_6] : memref<1x64xf32, #tpu.memory_space<vmem>>, vector<1x64xf32>
    %18 = vector.broadcast %17 : vector<1x64xf32> to vector<32x64xf32>
    %19 = arith.mulf %16, %18 : vector<32x64xf32>
    %c0_7 = arith.constant 0 : index
    %c0_8 = arith.constant 0 : index
    %20 = vector.load %arg3[%c0_7, %c0_8] : memref<1x64xf32, #tpu.memory_space<vmem>>, vector<1x64xf32>
    %21 = vector.broadcast %20 : vector<1x64xf32> to vector<32x64xf32>
    %22 = arith.addf %19, %21 : vector<32x64xf32>
    %23 = arith.truncf %22 : vector<32x64xf32> to vector<32x64xbf16>
    %c0_9 = arith.constant 0 : index
    %c0_10 = arith.constant 0 : index
    %24 = vector.load %arg4[%c0_9, %c0_10] : memref<64x32xbf16, #tpu.memory_space<vmem>>, vector<64x32xbf16>
    %cst_11 = arith.constant dense<0.000000e+00> : vector<32x32xf32>
    %25 = tpu.matmul %23, %24, %cst_11 {dimension_numbers = #tpu.dot_dimension_numbers<[1], [0], [0], [1], [0, 0, 1, 1], [], []>} : vector<32x64xbf16>, vector<64x32xbf16>, vector<32x32xf32> -> vector<32x32xf32>
    %c0_12 = arith.constant 0 : index
    %c0_13 = arith.constant 0 : index
    %26 = vector.load %arg5[%c0_12, %c0_13] : memref<1x32xf32, #tpu.memory_space<vmem>>, vector<1x32xf32>
    %27 = vector.broadcast %26 : vector<1x32xf32> to vector<32x32xf32>
    %28 = arith.addf %25, %27 : vector<32x32xf32>
    %29 = vector.shape_cast %28 : vector<32x32xf32> to vector<8x128xf32>
    %c0_14 = arith.constant 0 : index
    %c0_15 = arith.constant 0 : index
    %30 = vector.load %arg6[%c0_14, %c0_15] : memref<8x128xf32, #tpu.memory_space<vmem>>, vector<8x128xf32>
    tpu.vector_store %arg6[%c0_14, %c0_15], %29 {strides = array<i32>} : memref<8x128xf32, #tpu.memory_space<vmem>>, vector<8x128xf32>,
    return
  }
  func.func @transform_0(%arg0: i32) -> (i32, i32) {
    %c0_i32 = arith.constant 0 : i32
    %c0_i32_0 = arith.constant 0 : i32
    return %arg0, %c0_i32 : i32, i32
  }
  func.func @transform_1(%arg0: i32) -> (i32, i32) {
    %c0_i32 = arith.constant 0 : i32
    %c0_i32_0 = arith.constant 0 : i32
    %c0_i32_1 = arith.constant 0 : i32
    return %c0_i32, %c0_i32_0 : i32, i32
  }
  func.func @transform_2(%arg0: i32) -> (i32, i32) {
    %c0_i32 = arith.constant 0 : i32
    %c0_i32_0 = arith.constant 0 : i32
    %c0_i32_1 = arith.constant 0 : i32
    return %c0_i32, %c0_i32_0 : i32, i32
  }
  func.func @transform_3(%arg0: i32) -> (i32, i32) {
    %c0_i32 = arith.constant 0 : i32
    %c0_i32_0 = arith.constant 0 : i32
    %c0_i32_1 = arith.constant 0 : i32
    return %c0_i32, %c0_i32_0 : i32, i32
  }
  func.func @transform_4(%arg0: i32) -> (i32, i32) {
    %c0_i32 = arith.constant 0 : i32
    %c0_i32_0 = arith.constant 0 : i32
    %c0_i32_1 = arith.constant 0 : i32
    return %c0_i32, %c0_i32_0 : i32, i32
  }
  func.func @transform_5(%arg0: i32) -> (i32, i32) {
    %c0_i32 = arith.constant 0 : i32
    %c0_i32_0 = arith.constant 0 : i32
    return %arg0, %c0_i32 : i32, i32
  }
}

module attributes {stable_mosaic.version = 11 : i64} {
  func.func @_normfc_kernel(%arg0: i32, %arg1: memref<32x64xf32, #tpu.memory_space<vmem>>, %arg2: memref<1x64xf32, #tpu.memory_space<vmem>>, %arg3: memref<1x64xf32, #tpu.memory_space<vmem>>, %arg4: memref<64x32xbf16, #tpu.memory_space<vmem>>, %arg5: memref<1x32xf32, #tpu.memory_space<vmem>>, %arg6: memref<32x32xf32, #tpu.memory_space<vmem>>) attributes {dimension_semantics = [#tpu.dimension_semantics<parallel>], iteration_bounds = array<i64: 1>, scalar_prefetch = 0 : i64, scratch_operands = 0 : i64, tpu.core_type = #tpu.core_type<tc>, window_params = [{transform_indices = @transform_0, window_bounds = array<i64: 32, 64>}, {pipeline_mode = #tpu.pipeline_mode<synchronous>, transform_indices = @transform_1, window_bounds = array<i64: 1, 64>}, {pipeline_mode = #tpu.pipeline_mode<synchronous>, transform_indices = @transform_2, window_bounds = array<i64: 1, 64>}, {pipeline_mode = #tpu.pipeline_mode<synchronous>, transform_indices = @transform_3, window_bounds = array<i64: 64, 32>}, {pipeline_mode = #tpu.pipeline_mode<synchronous>, transform_indices = @transform_4, window_bounds = array<i64: 1, 32>}, {transform_indices = @transform_5, window_bounds = array<i64: 32, 32>}]} {
    %c0 = arith.constant 0 : index
    %c0_0 = arith.constant 0 : index
    %0 = vector.load %arg1[%c0, %c0_0] : memref<32x64xf32, #tpu.memory_space<vmem>>, vector<32x64xf32>
    %cst = arith.constant dense<0.000000e+00> : vector<32xf32>
    %1 = vector.multi_reduction <add>, %0, %cst [1] : vector<32x64xf32> to vector<32xf32>
    %2 = vector.shape_cast %1 : vector<32xf32> to vector<32x1xf32>
    %cst_1 = arith.constant 6.400000e+01 : f32
    %3 = vector.broadcast %cst_1 : f32 to vector<32x1xf32>
    %4 = arith.divf %2, %3 : vector<32x1xf32>
    %5 = vector.broadcast %4 : vector<32x1xf32> to vector<32x64xf32>
    %6 = arith.subf %0, %5 : vector<32x64xf32>
    %7 = arith.mulf %6, %6 : vector<32x64xf32>
    %cst_2 = arith.constant dense<0.000000e+00> : vector<32xf32>
    %8 = vector.multi_reduction <add>, %7, %cst_2 [1] : vector<32x64xf32> to vector<32xf32>
    %9 = vector.shape_cast %8 : vector<32xf32> to vector<32x1xf32>
    %cst_3 = arith.constant 6.400000e+01 : f32
    %10 = vector.broadcast %cst_3 : f32 to vector<32x1xf32>
    %11 = arith.divf %9, %10 : vector<32x1xf32>
    %cst_4 = arith.constant 9.99999974E-6 : f32
    %12 = vector.broadcast %cst_4 : f32 to vector<32x1xf32>
    %13 = arith.addf %11, %12 : vector<32x1xf32>
    %14 = math.rsqrt %13 : vector<32x1xf32>
    %15 = vector.broadcast %14 : vector<32x1xf32> to vector<32x64xf32>
    %16 = arith.mulf %6, %15 : vector<32x64xf32>
    %c0_5 = arith.constant 0 : index
    %c0_6 = arith.constant 0 : index
    %17 = vector.load %arg2[%c0_5, %c0_6] : memref<1x64xf32, #tpu.memory_space<vmem>>, vector<1x64xf32>
    %18 = vector.broadcast %17 : vector<1x64xf32> to vector<32x64xf32>
    %19 = arith.mulf %16, %18 : vector<32x64xf32>
    %c0_7 = arith.constant 0 : index
    %c0_8 = arith.constant 0 : index
    %20 = vector.load %arg3[%c0_7, %c0_8] : memref<1x64xf32, #tpu.memory_space<vmem>>, vector<1x64xf32>
    %21 = vector.broadcast %20 : vector<1x64xf32> to vector<32x64xf32>
    %22 = arith.addf %19, %21 : vector<32x64xf32>
    %23 = arith.truncf %22 : vector<32x64xf32> to vector<32x64xbf16>
    %c0_9 = arith.constant 0 : index
    %c0_10 = arith.constant 0 : index
    %24 = vector.load %arg4[%c0_9, %c0_10] : memref<64x32xbf16, #tpu.memory_space<vmem>>, vector<64x32xbf16>
    %cst_11 = arith.constant dense<0.000000e+00> : vector<32x32xf32>
    %25 = tpu.matmul %23, %24, %cst_11 {dimension_numbers = #tpu.dot_dimension_numbers<[1], [0], [0], [1], [0, 0, 1, 1], [], []>} : vector<32x64xbf16>, vector<64x32xbf16>, vector<32x32xf32> -> vector<32x32xf32>
    %c0_12 = arith.constant 0 : index
    %c0_13 = arith.constant 0 : index
    %26 = vector.load %arg5[%c0_12, %c0_13] : memref<1x32xf32, #tpu.memory_space<vmem>>, vector<1x32xf32>
    %27 = vector.broadcast %26 : vector<1x32xf32> to vector<32x32xf32>
    %28 = arith.addf %25, %27 : vector<32x32xf32>
    %c0_14 = arith.constant 0 : index
    %c0_15 = arith.constant 0 : index
    %29 = vector.load %arg6[%c0_14, %c0_15] : memref<32x32xf32, #tpu.memory_space<vmem>>, vector<32x32xf32>
    tpu.vector_store %arg6[%c0_14, %c0_15], %28 {strides = array<i32>} : memref<32x32xf32, #tpu.memory_space<vmem>>, vector<32x32xf32>,
    return
  }
  func.func @transform_0(%arg0: i32) -> (i32, i32) {
    %c0_i32 = arith.constant 0 : i32
    %c0_i32_0 = arith.constant 0 : i32
    return %arg0, %c0_i32 : i32, i32
  }
  func.func @transform_1(%arg0: i32) -> (i32, i32) {
    %c0_i32 = arith.constant 0 : i32
    %c0_i32_0 = arith.constant 0 : i32
    %c0_i32_1 = arith.constant 0 : i32
    return %c0_i32, %c0_i32_0 : i32, i32
  }
  func.func @transform_2(%arg0: i32) -> (i32, i32) {
    %c0_i32 = arith.constant 0 : i32
    %c0_i32_0 = arith.constant 0 : i32
    %c0_i32_1 = arith.constant 0 : i32
    return %c0_i32, %c0_i32_0 : i32, i32
  }
  func.func @transform_3(%arg0: i32) -> (i32, i32) {
    %c0_i32 = arith.constant 0 : i32
    %c0_i32_0 = arith.constant 0 : i32
    %c0_i32_1 = arith.constant 0 : i32
    return %c0_i32, %c0_i32_0 : i32, i32
  }
  func.func @transform_4(%arg0: i32) -> (i32, i32) {
    %c0_i32 = arith.constant 0 : i32
    %c0_i32_0 = arith.constant 0 : i32
    %c0_i32_1 = arith.constant 0 : i32
    return %c0_i32, %c0_i32_0 : i32, i32
  }
  func.func @transform_5(%arg0: i32) -> (i32, i32) {
    %c0_i32 = arith.constant 0 : i32
    %c0_i32_0 = arith.constant 0 : i32
    return %arg0, %c0_i32 : i32, i32
  }
}

module attributes {stable_mosaic.version = 11 : i64} {
  func.func @_normfc_kernel(%arg0: i32, %arg1: memref<32x64xf32, #tpu.memory_space<vmem>>, %arg2: memref<1x64xf32, #tpu.memory_space<vmem>>, %arg3: memref<1x64xf32, #tpu.memory_space<vmem>>, %arg4: memref<64x32xbf16, #tpu.memory_space<vmem>>, %arg5: memref<1x32xf32, #tpu.memory_space<vmem>>, %arg6: memref<32x32xf32, #tpu.memory_space<vmem>>) attributes {dimension_semantics = [#tpu.dimension_semantics<parallel>], iteration_bounds = array<i64: 1>, scalar_prefetch = 0 : i64, scratch_operands = 0 : i64, tpu.core_type = #tpu.core_type<tc>, window_params = [{transform_indices = @transform_0, window_bounds = array<i64: 32, 64>}, {pipeline_mode = #tpu.pipeline_mode<synchronous>, transform_indices = @transform_1, window_bounds = array<i64: 1, 64>}, {pipeline_mode = #tpu.pipeline_mode<synchronous>, transform_indices = @transform_2, window_bounds = array<i64: 1, 64>}, {pipeline_mode = #tpu.pipeline_mode<synchronous>, transform_indices = @transform_3, window_bounds = array<i64: 64, 32>}, {pipeline_mode = #tpu.pipeline_mode<synchronous>, transform_indices = @transform_4, window_bounds = array<i64: 1, 32>}, {transform_indices = @transform_5, window_bounds = array<i64: 32, 32>}]} {
    %c0 = arith.constant 0 : index
    %c0_0 = arith.constant 0 : index
    %0 = vector.load %arg1[%c0, %c0_0] : memref<32x64xf32, #tpu.memory_space<vmem>>, vector<32x64xf32>
    %cst = arith.constant dense<0.000000e+00> : vector<32xf32>
    %1 = vector.multi_reduction <add>, %0, %cst [1] : vector<32x64xf32> to vector<32xf32>
    %2 = vector.shape_cast %1 : vector<32xf32> to vector<32x1xf32>
    %cst_1 = arith.constant 6.400000e+01 : f32
    %3 = vector.broadcast %cst_1 : f32 to vector<32x1xf32>
    %4 = arith.divf %2, %3 : vector<32x1xf32>
    %5 = vector.broadcast %4 : vector<32x1xf32> to vector<32x64xf32>
    %6 = arith.subf %0, %5 : vector<32x64xf32>
    %7 = arith.mulf %6, %6 : vector<32x64xf32>
    %cst_2 = arith.constant dense<0.000000e+00> : vector<32xf32>
    %8 = vector.multi_reduction <add>, %7, %cst_2 [1] : vector<32x64xf32> to vector<32xf32>
    %9 = vector.shape_cast %8 : vector<32xf32> to vector<32x1xf32>
    %cst_3 = arith.constant 6.400000e+01 : f32
    %10 = vector.broadcast %cst_3 : f32 to vector<32x1xf32>
    %11 = arith.divf %9, %10 : vector<32x1xf32>
    %cst_4 = arith.constant 9.99999974E-6 : f32
    %12 = vector.broadcast %cst_4 : f32 to vector<32x1xf32>
    %13 = arith.addf %11, %12 : vector<32x1xf32>
    %14 = math.rsqrt %13 : vector<32x1xf32>
    %15 = vector.broadcast %14 : vector<32x1xf32> to vector<32x64xf32>
    %16 = arith.mulf %6, %15 : vector<32x64xf32>
    %c0_5 = arith.constant 0 : index
    %c0_6 = arith.constant 0 : index
    %17 = vector.load %arg2[%c0_5, %c0_6] : memref<1x64xf32, #tpu.memory_space<vmem>>, vector<1x64xf32>
    %18 = vector.broadcast %17 : vector<1x64xf32> to vector<32x64xf32>
    %19 = arith.mulf %16, %18 : vector<32x64xf32>
    %c0_7 = arith.constant 0 : index
    %c0_8 = arith.constant 0 : index
    %20 = vector.load %arg3[%c0_7, %c0_8] : memref<1x64xf32, #tpu.memory_space<vmem>>, vector<1x64xf32>
    %21 = vector.broadcast %20 : vector<1x64xf32> to vector<32x64xf32>
    %22 = arith.addf %19, %21 : vector<32x64xf32>
    %23 = arith.truncf %22 : vector<32x64xf32> to vector<32x64xbf16>
    %c0_9 = arith.constant 0 : index
    %c0_10 = arith.constant 0 : index
    %24 = vector.load %arg4[%c0_9, %c0_10] : memref<64x32xbf16, #tpu.memory_space<vmem>>, vector<64x32xbf16>
    %cst_11 = arith.constant dense<0.000000e+00> : vector<32x32xf32>
    %25 = tpu.matmul %23, %24, %cst_11 {dimension_numbers = #tpu.dot_dimension_numbers<[1], [0], [0], [1], [0, 0, 1, 1], [], []>} : vector<32x64xbf16>, vector<64x32xbf16>, vector<32x32xf32> -> vector<32x32xf32>
    %c0_12 = arith.constant 0 : index
    %c0_13 = arith.constant 0 : index
    %26 = vector.load %arg5[%c0_12, %c0_13] : memref<1x32xf32, #tpu.memory_space<vmem>>, vector<1x32xf32>
    %27 = vector.broadcast %26 : vector<1x32xf32> to vector<32x32xf32>
    %28 = arith.addf %25, %27 : vector<32x32xf32>
    %c0_14 = arith.constant 0 : index
    %c0_15 = arith.constant 0 : index
    %29 = vector.load %arg6[%c0_14, %c0_15] : memref<32x32xf32, #tpu.memory_space<vmem>>, vector<32x32xf32>
    tpu.vector_store %arg6[%c0_14, %c0_15], %28 {strides = array<i32>} : memref<32x32xf32, #tpu.memory_space<vmem>>, vector<32x32xf32>,
    return
  }
  func.func @transform_0(%arg0: i32) -> (i32, i32) {
    %c0_i32 = arith.constant 0 : i32
    %c0_i32_0 = arith.constant 0 : i32
    return %arg0, %c0_i32 : i32, i32
  }
  func.func @transform_1(%arg0: i32) -> (i32, i32) {
    %c0_i32 = arith.constant 0 : i32
    %c0_i32_0 = arith.constant 0 : i32
    %c0_i32_1 = arith.constant 0 : i32
    return %c0_i32, %c0_i32_0 : i32, i32
  }
  func.func @transform_2(%arg0: i32) -> (i32, i32) {
    %c0_i32 = arith.constant 0 : i32
    %c0_i32_0 = arith.constant 0 : i32
    %c0_i32_1 = arith.constant 0 : i32
    return %c0_i32, %c0_i32_0 : i32, i32
  }
  func.func @transform_3(%arg0: i32) -> (i32, i32) {
    %c0_i32 = arith.constant 0 : i32
    %c0_i32_0 = arith.constant 0 : i32
    %c0_i32_1 = arith.constant 0 : i32
    return %c0_i32, %c0_i32_0 : i32, i32
  }
  func.func @transform_4(%arg0: i32) -> (i32, i32) {
    %c0_i32 = arith.constant 0 : i32
    %c0_i32_0 = arith.constant 0 : i32
    %c0_i32_1 = arith.constant 0 : i32
    return %c0_i32, %c0_i32_0 : i32, i32
  }
  func.func @transform_5(%arg0: i32) -> (i32, i32) {
    %c0_i32 = arith.constant 0 : i32
    %c0_i32_0 = arith.constant 0 : i32
    return %arg0, %c0_i32 : i32, i32
  }
}

</mosaic_0001>

<llo_original>
// kernel: run.1
$region0: #{run.1}
  #allocation0 [shape = 'u32[]', space=smem, size = 0x4, offset = 0x4, fixed_abs, tag = 'smem constant byte address 0x4 - core index']
  #allocation1 [shape = 'u32[144,128]{1,0:T(1,128)}', space=vmem, size = 0x12000, scoped, tag = 'internal scratch']
  %s0 = inlined_call_operand.vmem [shape: f32[32,64], index: 0, kind: input, shape index: {}]
  %s1 = inlined_call_operand.vmem [shape: f32[1,64], index: 1, kind: input, shape index: {}]
  %s2 = inlined_call_operand.vmem [shape: f32[1,64], index: 2, kind: input, shape index: {}]
  %s3 = inlined_call_operand.vmem [shape: bf16[64,32], index: 3, kind: input, shape index: {}]
  %s4 = inlined_call_operand.vmem [shape: f32[1,32], index: 4, kind: input, shape index: {}]
  %s5 = inlined_call_operand.hbm [shape: f32[32,32], index: 5, kind: output, shape index: {}]
  %s6 = sld [smem:[#allocation0]]
  $region30: #{run.1} parent=0
    _
  %s8 = ssub.s32 1, %s6
  %s9 = scalar_select 0, %s8, %s6
  $region1: #{run.1} parent=0
    #allocation2 [shape = 'u8[16384]{0}', space=vmem, size = 0x4000, scoped, tag = 'output window, operand 0, single buffered']
    #allocation3 [shape = 's32[1]{0}', space=sflag, size = 0x4, scoped, tag = 'scoped memory for run.1']
    %10 = vsyncpa [#allocation3], 0
    // Predicated region
    $region2: #{run.1} parent=1 // pred_check
      _
    $region3: #{run.1} parent=1 // pred_check_branch
      %12 = sbr.rel (0) target = $region5
    $region4: #{run.1} parent=1 // pred_region
      _
    $region5: #{run.1} parent=1 // pred_fallthru
      _
    // Predicated region
    $region6: #{run.1} parent=1 // pred_check
      _
    $region7: #{run.1} parent=1 // pred_check_branch
      %14 = sbr.rel (0) target = $region9
    $region8: #{run.1} parent=1 // pred_region
      _
    $region9: #{run.1} parent=1 // pred_fallthru
      _
    // Predicated region
    $region10: #{run.1} parent=1 // pred_check
      _
    $region11: #{run.1} parent=1 // pred_check_branch
      %16 = sbr.rel (0) target = $region13
    $region12: #{run.1} parent=1 // pred_region
      _
    $region13: #{run.1} parent=1 // pred_fallthru
      _
    // Predicated region
    $region14: #{run.1} parent=1 // pred_check
      _
    $region15: #{run.1} parent=1 // pred_check_branch
      %18 = sbr.rel (0) target = $region17
    $region16: #{run.1} parent=1 // pred_region
      _
    $region17: #{run.1} parent=1 // pred_fallthru
      _
    // Predicated region
    $region18: #{run.1} parent=1 // pred_check
      _
    $region19: #{run.1} parent=1 // pred_check_branch
      %20 = sbr.rel (0) target = $region21
    $region20: #{run.1} parent=1 // pred_region
      _
    $region21: #{run.1} parent=1 // pred_fallthru
      _
    %v22 = vld [vmem:[%s0] sm:$0xff]
    %v23 = vld [vmem:[%s0 + $0x8] sm:$0xff]
    %v24 = vld [vmem:[%s0 + $0x10] sm:$0xff]
    %v25 = vld [vmem:[%s0 + $0x18] sm:$0xff]
    %vm26 = vcmask 523264
    %v27 = vsel %vm26, %v22, 0.0
    %28 = vadd.xlane.f32.xlu0 %v27
    %v29 = vpop.xlane.xlu0 %28
    %v30 = vsel %vm26, %v23, 0.0
    %31 = vadd.xlane.f32.xlu0 %v30
    %v32 = vpop.xlane.xlu0 %31
    %v33 = vsel %vm26, %v24, 0.0
    %34 = vadd.xlane.f32.xlu0 %v33
    %v35 = vpop.xlane.xlu0 %34
    %v36 = vsel %vm26, %v25, 0.0
    %37 = vadd.xlane.f32.xlu0 %v36
    %v38 = vpop.xlane.xlu0 %37
    %v39 = vrcp.pop 64.0
    %v40 = vmul.f32 %v29, %v39
    %v41 = vmul.f32 %v32, %v39
    %v42 = vmul.f32 %v35, %v39
    %v43 = vmul.f32 %v38, %v39
    %v44 = vsub.f32 %v22, %v40
    %v45 = vsub.f32 %v23, %v41
    %v46 = vsub.f32 %v24, %v42
    %v47 = vsub.f32 %v25, %v43
    %v48 = vmul.f32 %v44, %v44
    %v49 = vmul.f32 %v45, %v45
    %v50 = vmul.f32 %v46, %v46
    %v51 = vmul.f32 %v47, %v47
    %v52 = vsel %vm26, %v48, 0.0
    %53 = vadd.xlane.f32.xlu0 %v52
    %v54 = vpop.xlane.xlu0 %53
    %v55 = vsel %vm26, %v49, 0.0
    %56 = vadd.xlane.f32.xlu0 %v55
    %v57 = vpop.xlane.xlu0 %56
    %v58 = vsel %vm26, %v50, 0.0
    %59 = vadd.xlane.f32.xlu0 %v58
    %v60 = vpop.xlane.xlu0 %59
    %v61 = vsel %vm26, %v51, 0.0
    %62 = vadd.xlane.f32.xlu0 %v61
    %v63 = vpop.xlane.xlu0 %62
    %v64 = vmul.f32 %v54, %v39
    %v65 = vmul.f32 %v57, %v39
    %v66 = vmul.f32 %v60, %v39
    %v67 = vmul.f32 %v63, %v39
    %v68 = vadd.f32 %v64, 1e-05
    %v69 = vadd.f32 %v65, 1e-05
    %v70 = vadd.f32 %v66, 1e-05
    %v71 = vadd.f32 %v67, 1e-05
    %v72 = vrsqrt.pop %v68
    %v73 = vrsqrt.pop %v69
    %v74 = vrsqrt.pop %v70
    %v75 = vrsqrt.pop %v71
    %v76 = vmul.f32 %v44, %v72
    %v77 = vmul.f32 %v45, %v73
    %v78 = vmul.f32 %v46, %v74
    %v79 = vmul.f32 %v47, %v75
    %v80 = vld [vmem:[%s1] sm:$0x1]
    %v82 = vlaneseq
    %v83 = vshrl.u32 %v82, 7
    %v84 = vsub.s32 0, %v83
    %v85 = vrot.slane %v80, %v84
    %v87 = vmul.f32 %v76, %v85
    %v88 = vmul.f32 %v77, %v85
    %v89 = vmul.f32 %v78, %v85
    %v90 = vmul.f32 %v79, %v85
    %v91 = vld [vmem:[%s2] sm:$0x1]
    %v93 = vlaneseq
    %v94 = vshrl.u32 %v93, 7
    %v95 = vsub.s32 0, %v94
    %v96 = vrot.slane %v91, %v95
    %v98 = vadd.f32 %v87, %v96
    %v99 = vadd.f32 %v88, %v96
    %v100 = vadd.f32 %v89, %v96
    %v101 = vadd.f32 %v90, %v96
    %v102 = vpack.c.bf16 %v99, %v98
    %v103 = vpack.c.bf16 %v101, %v100
    %v104 = vld [vmem:[%s3] sm:$0xf]
    %v105 = vld [vmem:[%s3 + $0x4] sm:$0xf]
    %v106 = vld [vmem:[%s3 + $0x8] sm:$0xf]
    %v107 = vld [vmem:[%s3 + $0xc] sm:$0xf]
    %v108 = vld [vmem:[%s3 + $0x10] sm:$0xf]
    %v109 = vld [vmem:[%s3 + $0x14] sm:$0xf]
    %v110 = vld [vmem:[%s3 + $0x18] sm:$0xf]
    %v111 = vld [vmem:[%s3 + $0x1c] sm:$0xf]
    %v112 = vld [vmem:[%s4] sm:$0x1]
    %v114 = vlaneseq
    %v115 = vshrl.u32 %v114, 7
    %v116 = vsub.s32 0, %v115
    %v117 = vrot.slane %v112, %v116
    %v127 = vunpack.c.l.b16 %v104
    %v128 = vunpack.c.l.b16 %v105
    %v129 = vunpack.c.l.b16 %v106
    %v130 = vunpack.c.l.b16 %v107
    %v131 = vunpack.c.l.b16 %v108
    %v132 = vunpack.c.l.b16 %v109
    %v133 = vunpack.c.l.b16 %v110
    %v134 = vunpack.c.l.b16 %v111
    %v135 = vpack.c.b16 %v128, %v127
    %v136 = vpack.c.b16 %v130, %v129
    %v137 = vpack.c.b16 %v132, %v131
    %v138 = vpack.c.b16 %v134, %v133
    %v144 = vsel %vm26, %v102, 0
    %v147 = vsel %vm26, %v103, 0
    %149 = vmatprep.subr.bf16.mxu0 0
    %150 = vmatpush1.bf16.msra.mxu0 %v135
    %151 = vmatprep.subr.bf16.mxu0 0
    %152 = vmatpush1.bf16.msra.mxu0 %v136
    %153 = vmatprep.subr.bf16.mxu0 0
    %154 = vmatpush1.bf16.msra.mxu0 %v137
    %155 = vmatprep.subr.bf16.mxu0 0
    %156 = vmatpush1.bf16.msra.mxu0 %v138
    %157 = vmatprep.subr.bf16.mxu0 0
    %158 = vmatpush1.bf16.msra.mxu0 0
    %159 = vmatprep.subr.bf16.mxu0 0
    %160 = vmatpush1.bf16.msra.mxu0 0
    %161 = vmatprep.subr.bf16.mxu0 0
    %162 = vmatpush1.bf16.msra.mxu0 0
    %163 = vmatprep.subr.bf16.mxu0 0
    %164 = vmatpush1.bf16.msra.mxu0 0
    %165 = vmatprep.subr.bf16.mxu0 0
    %166 = vmatpush1.bf16.msra.mxu0 0
    %167 = vmatprep.subr.bf16.mxu0 0
    %168 = vmatpush1.bf16.msra.mxu0 0
    %169 = vmatprep.subr.bf16.mxu0 0
    %170 = vmatpush1.bf16.msra.mxu0 0
    %171 = vmatprep.subr.bf16.mxu0 0
    %172 = vmatpush1.bf16.msra.mxu0 0
    %173 = vmatprep.subr.bf16.mxu0 0
    %174 = vmatpush1.bf16.msra.mxu0 0
    %175 = vmatprep.subr.bf16.mxu0 0
    %176 = vmatpush1.bf16.msra.mxu0 0
    %177 = vmatprep.subr.bf16.mxu0 0
    %178 = vmatpush1.bf16.msra.mxu0 0
    %179 = vmatprep.subr.bf16.mxu0 0
    %180 = vmatpush1.bf16.msra.mxu0 0
    %181 = vmatprep.mubr.bf16.mxu0 0
    %182 = vmatmul.mubr.bf16.gmra.mrb[0].mxu0 %v144
    %v183 = vpop.f32.mrb[0].mxu0
    %v184 = vadd.f32 %v117, %v183
    %v185 = vpop.f32.mrb[0].mxu0
    %v186 = vpop.f32.mrb[0].mxu0
    %v187 = vadd.f32 %v117, %v186
    %v188 = vpop.f32.mrb[0].mxu0
    %189 = vmatprep.mubr.bf16.mxu0 0
    %190 = vmatmul.mubr.bf16.gmra.mrb[0].mxu0 %v147
    %v191 = vpop.f32.mrb[0].mxu0
    %v192 = vadd.f32 %v117, %v191
    %v193 = vpop.f32.mrb[0].mxu0
    %v194 = vpop.f32.mrb[0].mxu0
    %v195 = vadd.f32 %v117, %v194
    %v196 = vpop.f32.mrb[0].mxu0
    %197 = vdwg.mxu0
    %vm198 = vcmask 261120
    %199 = vst.msk [vmem:[#allocation2] sm:$0xff] %vm198, %v184
    %200 = vst.msk [vmem:[#allocation2 + $0x8] sm:$0xff] %vm198, %v187
    %201 = vst.msk [vmem:[#allocation2 + $0x10] sm:$0xff] %vm198, %v192
    %202 = vst.msk [vmem:[#allocation2 + $0x18] sm:$0xff] %vm198, %v195
    // Predicated region
    $region22: #{run.1} parent=1 // pred_check
      _
    $region23: #{run.1} parent=1 // pred_check_branch
      %204 = sbr.rel (0) target = $region25
    $region24: #{run.1} parent=1 // pred_region
      %s206 = ssub.s32 512, 512
      %207 = vsyncadd [#allocation3], %s206
      %s208 = sshll.u32 [#allocation2], 4
      %s209 = int_to_ptr.vmem [resolvable:$true] %s208
      %214 = dma.vmem_to_hbm [thread:$0]  %s209, 512, %s5, [#allocation3], 128, 128, 8
    $region25: #{run.1} parent=1 // pred_fallthru
      _
    // Predicated region
    $region26: #{run.1} parent=1 // pred_check
      _
    $region27: #{run.1} parent=1 // pred_check_branch
      %216 = sbr.rel (0) target = $region29
    $region28: #{run.1} parent=1 // pred_region
      %217 = dma.done [#allocation3], 512
    $region29: #{run.1} parent=1 // pred_fallthru
      _
    %218 = vsyncpa [#allocation3], 1

// kernel: run.1
$region0: #{run.1}
  #allocation0 [shape = 'u32[]', space=smem, size = 0x4, offset = 0x4, fixed_abs, tag = 'smem constant byte address 0x4 - core index']
  #allocation1 [shape = 'u32[144,128]{1,0:T(1,128)}', space=vmem, size = 0x12000, scoped, tag = 'internal scratch']
  %s0 = inlined_call_operand.vmem [shape: f32[32,64], index: 0, kind: input, shape index: {}]
  %s1 = inlined_call_operand.vmem [shape: f32[1,64], index: 1, kind: input, shape index: {}]
  %s2 = inlined_call_operand.vmem [shape: f32[1,64], index: 2, kind: input, shape index: {}]
  %s3 = inlined_call_operand.vmem [shape: bf16[64,32], index: 3, kind: input, shape index: {}]
  %s4 = inlined_call_operand.vmem [shape: f32[1,32], index: 4, kind: input, shape index: {}]
  %s5 = inlined_call_operand.hbm [shape: f32[32,32], index: 5, kind: output, shape index: {}]
  %s6 = sld [smem:[#allocation0]]
  $region30: #{run.1} parent=0
    _
  %s8 = ssub.s32 1, %s6
  %s9 = scalar_select 0, %s8, %s6
  $region1: #{run.1} parent=0
    #allocation2 [shape = 'u8[16384]{0}', space=vmem, size = 0x4000, scoped, tag = 'output window, operand 0, single buffered']
    #allocation3 [shape = 's32[1]{0}', space=sflag, size = 0x4, scoped, tag = 'scoped memory for run.1']
    %10 = vsyncpa [#allocation3], 0
    // Predicated region
    $region2: #{run.1} parent=1 // pred_check
      _
    $region3: #{run.1} parent=1 // pred_check_branch
      %12 = sbr.rel (0) target = $region5
    $region4: #{run.1} parent=1 // pred_region
      _
    $region5: #{run.1} parent=1 // pred_fallthru
      _
    // Predicated region
    $region6: #{run.1} parent=1 // pred_check
      _
    $region7: #{run.1} parent=1 // pred_check_branch
      %14 = sbr.rel (0) target = $region9
    $region8: #{run.1} parent=1 // pred_region
      _
    $region9: #{run.1} parent=1 // pred_fallthru
      _
    // Predicated region
    $region10: #{run.1} parent=1 // pred_check
      _
    $region11: #{run.1} parent=1 // pred_check_branch
      %16 = sbr.rel (0) target = $region13
    $region12: #{run.1} parent=1 // pred_region
      _
    $region13: #{run.1} parent=1 // pred_fallthru
      _
    // Predicated region
    $region14: #{run.1} parent=1 // pred_check
      _
    $region15: #{run.1} parent=1 // pred_check_branch
      %18 = sbr.rel (0) target = $region17
    $region16: #{run.1} parent=1 // pred_region
      _
    $region17: #{run.1} parent=1 // pred_fallthru
      _
    // Predicated region
    $region18: #{run.1} parent=1 // pred_check
      _
    $region19: #{run.1} parent=1 // pred_check_branch
      %20 = sbr.rel (0) target = $region21
    $region20: #{run.1} parent=1 // pred_region
      _
    $region21: #{run.1} parent=1 // pred_fallthru
      _
    %v22 = vld [vmem:[%s0] sm:$0xff]
    %v23 = vld [vmem:[%s0 + $0x8] sm:$0xff]
    %v24 = vld [vmem:[%s0 + $0x10] sm:$0xff]
    %v25 = vld [vmem:[%s0 + $0x18] sm:$0xff]
    %vm26 = vcmask 523264
    %v27 = vsel %vm26, %v22, 0.0
    %28 = vadd.xlane.f32.xlu0 %v27
    %v29 = vpop.xlane.xlu0 %28
    %v30 = vsel %vm26, %v23, 0.0
    %31 = vadd.xlane.f32.xlu0 %v30
    %v32 = vpop.xlane.xlu0 %31
    %v33 = vsel %vm26, %v24, 0.0
    %34 = vadd.xlane.f32.xlu0 %v33
    %v35 = vpop.xlane.xlu0 %34
    %v36 = vsel %vm26, %v25, 0.0
    %37 = vadd.xlane.f32.xlu0 %v36
    %v38 = vpop.xlane.xlu0 %37
    %v39 = vrcp.pop 64.0
    %v40 = vmul.f32 %v29, %v39
    %v41 = vmul.f32 %v32, %v39
    %v42 = vmul.f32 %v35, %v39
    %v43 = vmul.f32 %v38, %v39
    %v44 = vsub.f32 %v22, %v40
    %v45 = vsub.f32 %v23, %v41
    %v46 = vsub.f32 %v24, %v42
    %v47 = vsub.f32 %v25, %v43
    %v48 = vmul.f32 %v44, %v44
    %v49 = vmul.f32 %v45, %v45
    %v50 = vmul.f32 %v46, %v46
    %v51 = vmul.f32 %v47, %v47
    %v52 = vsel %vm26, %v48, 0.0
    %53 = vadd.xlane.f32.xlu0 %v52
    %v54 = vpop.xlane.xlu0 %53
    %v55 = vsel %vm26, %v49, 0.0
    %56 = vadd.xlane.f32.xlu0 %v55
    %v57 = vpop.xlane.xlu0 %56
    %v58 = vsel %vm26, %v50, 0.0
    %59 = vadd.xlane.f32.xlu0 %v58
    %v60 = vpop.xlane.xlu0 %59
    %v61 = vsel %vm26, %v51, 0.0
    %62 = vadd.xlane.f32.xlu0 %v61
    %v63 = vpop.xlane.xlu0 %62
    %v64 = vmul.f32 %v54, %v39
    %v65 = vmul.f32 %v57, %v39
    %v66 = vmul.f32 %v60, %v39
    %v67 = vmul.f32 %v63, %v39
    %v68 = vadd.f32 %v64, 1e-05
    %v69 = vadd.f32 %v65, 1e-05
    %v70 = vadd.f32 %v66, 1e-05
    %v71 = vadd.f32 %v67, 1e-05
    %v72 = vrsqrt.pop %v68
    %v73 = vrsqrt.pop %v69
    %v74 = vrsqrt.pop %v70
    %v75 = vrsqrt.pop %v71
    %v76 = vmul.f32 %v44, %v72
    %v77 = vmul.f32 %v45, %v73
    %v78 = vmul.f32 %v46, %v74
    %v79 = vmul.f32 %v47, %v75
    %v80 = vld [vmem:[%s1] sm:$0x1]
    %v82 = vlaneseq
    %v83 = vshrl.u32 %v82, 7
    %v84 = vsub.s32 0, %v83
    %v85 = vrot.slane %v80, %v84
    %v87 = vmul.f32 %v76, %v85
    %v88 = vmul.f32 %v77, %v85
    %v89 = vmul.f32 %v78, %v85
    %v90 = vmul.f32 %v79, %v85
    %v91 = vld [vmem:[%s2] sm:$0x1]
    %v93 = vlaneseq
    %v94 = vshrl.u32 %v93, 7
    %v95 = vsub.s32 0, %v94
    %v96 = vrot.slane %v91, %v95
    %v98 = vadd.f32 %v87, %v96
    %v99 = vadd.f32 %v88, %v96
    %v100 = vadd.f32 %v89, %v96
    %v101 = vadd.f32 %v90, %v96
    %v102 = vpack.c.bf16 %v99, %v98
    %v103 = vpack.c.bf16 %v101, %v100
    %v104 = vld [vmem:[%s3] sm:$0xf]
    %v105 = vld [vmem:[%s3 + $0x4] sm:$0xf]
    %v106 = vld [vmem:[%s3 + $0x8] sm:$0xf]
    %v107 = vld [vmem:[%s3 + $0xc] sm:$0xf]
    %v108 = vld [vmem:[%s3 + $0x10] sm:$0xf]
    %v109 = vld [vmem:[%s3 + $0x14] sm:$0xf]
    %v110 = vld [vmem:[%s3 + $0x18] sm:$0xf]
    %v111 = vld [vmem:[%s3 + $0x1c] sm:$0xf]
    %v112 = vld [vmem:[%s4] sm:$0x1]
    %v114 = vlaneseq
    %v115 = vshrl.u32 %v114, 7
    %v116 = vsub.s32 0, %v115
    %v117 = vrot.slane %v112, %v116
    %v127 = vunpack.c.l.b16 %v104
    %v128 = vunpack.c.l.b16 %v105
    %v129 = vunpack.c.l.b16 %v106
    %v130 = vunpack.c.l.b16 %v107
    %v131 = vunpack.c.l.b16 %v108
    %v132 = vunpack.c.l.b16 %v109
    %v133 = vunpack.c.l.b16 %v110
    %v134 = vunpack.c.l.b16 %v111
    %v135 = vpack.c.b16 %v128, %v127
    %v136 = vpack.c.b16 %v130, %v129
    %v137 = vpack.c.b16 %v132, %v131
    %v138 = vpack.c.b16 %v134, %v133
    %v144 = vsel %vm26, %v102, 0
    %v147 = vsel %vm26, %v103, 0
    %149 = vmatprep.subr.bf16.mxu0 0
    %150 = vmatpush1.bf16.msra.mxu0 %v135
    %151 = vmatprep.subr.bf16.mxu0 0
    %152 = vmatpush1.bf16.msra.mxu0 %v136
    %153 = vmatprep.subr.bf16.mxu0 0
    %154 = vmatpush1.bf16.msra.mxu0 %v137
    %155 = vmatprep.subr.bf16.mxu0 0
    %156 = vmatpush1.bf16.msra.mxu0 %v138
    %157 = vmatprep.subr.bf16.mxu0 0
    %158 = vmatpush1.bf16.msra.mxu0 0
    %159 = vmatprep.subr.bf16.mxu0 0
    %160 = vmatpush1.bf16.msra.mxu0 0
    %161 = vmatprep.subr.bf16.mxu0 0
    %162 = vmatpush1.bf16.msra.mxu0 0
    %163 = vmatprep.subr.bf16.mxu0 0
    %164 = vmatpush1.bf16.msra.mxu0 0
    %165 = vmatprep.subr.bf16.mxu0 0
    %166 = vmatpush1.bf16.msra.mxu0 0
    %167 = vmatprep.subr.bf16.mxu0 0
    %168 = vmatpush1.bf16.msra.mxu0 0
    %169 = vmatprep.subr.bf16.mxu0 0
    %170 = vmatpush1.bf16.msra.mxu0 0
    %171 = vmatprep.subr.bf16.mxu0 0
    %172 = vmatpush1.bf16.msra.mxu0 0
    %173 = vmatprep.subr.bf16.mxu0 0
    %174 = vmatpush1.bf16.msra.mxu0 0
    %175 = vmatprep.subr.bf16.mxu0 0
    %176 = vmatpush1.bf16.msra.mxu0 0
    %177 = vmatprep.subr.bf16.mxu0 0
    %178 = vmatpush1.bf16.msra.mxu0 0
    %179 = vmatprep.subr.bf16.mxu0 0
    %180 = vmatpush1.bf16.msra.mxu0 0
    %181 = vmatprep.mubr.bf16.mxu0 0
    %182 = vmatmul.mubr.bf16.gmra.mrb[0].mxu0 %v144
    %v183 = vpop.f32.mrb[0].mxu0
    %v184 = vadd.f32 %v117, %v183
    %v185 = vpop.f32.mrb[0].mxu0
    %v186 = vpop.f32.mrb[0].mxu0
    %v187 = vadd.f32 %v117, %v186
    %v188 = vpop.f32.mrb[0].mxu0
    %189 = vmatprep.mubr.bf16.mxu0 0
    %190 = vmatmul.mubr.bf16.gmra.mrb[0].mxu0 %v147
    %v191 = vpop.f32.mrb[0].mxu0
    %v192 = vadd.f32 %v117, %v191
    %v193 = vpop.f32.mrb[0].mxu0
    %v194 = vpop.f32.mrb[0].mxu0
    %v195 = vadd.f32 %v117, %v194
    %v196 = vpop.f32.mrb[0].mxu0
    %197 = vdwg.mxu0
    %vm198 = vcmask 261120
    %199 = vst.msk [vmem:[#allocation2] sm:$0xff] %vm198, %v184
    %200 = vst.msk [vmem:[#allocation2 + $0x8] sm:$0xff] %vm198, %v187
    %201 = vst.msk [vmem:[#allocation2 + $0x10] sm:$0xff] %vm198, %v192
    %202 = vst.msk [vmem:[#allocation2 + $0x18] sm:$0xff] %vm198, %v195
    // Predicated region
    $region22: #{run.1} parent=1 // pred_check
      _
    $region23: #{run.1} parent=1 // pred_check_branch
      %204 = sbr.rel (0) target = $region25
    $region24: #{run.1} parent=1 // pred_region
      %s206 = ssub.s32 512, 512
      %207 = vsyncadd [#allocation3], %s206
      %s208 = sshll.u32 [#allocation2], 4
      %s209 = int_to_ptr.vmem [resolvable:$true] %s208
      %214 = dma.vmem_to_hbm [thread:$0]  %s209, 512, %s5, [#allocation3], 128, 128, 8
    $region25: #{run.1} parent=1 // pred_fallthru
      _
    // Predicated region
    $region26: #{run.1} parent=1 // pred_check
      _
    $region27: #{run.1} parent=1 // pred_check_branch
      %216 = sbr.rel (0) target = $region29
    $region28: #{run.1} parent=1 // pred_region
      %217 = dma.done [#allocation3], 512
    $region29: #{run.1} parent=1 // pred_fallthru
      _
    %218 = vsyncpa [#allocation3], 1

</llo_original>
